<compile_context>
chip_gen: v7x
topology: tpu7x:2x2x1
jax: 0.10.0
libtpu: 0.0.40
codegen_flags: <defaults>
</compile_context>

<pallas_src>
import functools

import jax
import jax.numpy as jnp
from jax.experimental import pallas as pl
from jax.experimental.pallas import tpu as pltpu


def _round_up(n, m):
    return ((n + m - 1) // m) * m


# ---------------------------------------------------------------------------
# Kernel: two independent MXU matmuls on the same streamed x block.
# ---------------------------------------------------------------------------
def _mlp_pre_kernel(x_ref, wa_ref, ba_ref, wac_ref, bac_ref, out_ref, x2_ref):
    x = x_ref[...]
    # x2 = l4(l3(l2(l1(x))))  -- folded affine chain (f32 accumulation).
    x2 = jnp.dot(x, wa_ref[...], preferred_element_type=jnp.float32) + ba_ref[...]
    # out = classify(x2) = x @ (W_a @ W_c) + (b_a @ W_c + b_c)
    # (reads the SAME x operand -> no serial dependency on the first dot).
    out = jnp.dot(x, wac_ref[...], preferred_element_type=jnp.float32) + bac_ref[...]
    x2_ref[...] = x2.astype(x2_ref.dtype)
    out_ref[...] = out.astype(out_ref.dtype)


# ---------------------------------------------------------------------------
# Parameter preparation (call once; reuse across forward calls)
# ---------------------------------------------------------------------------
def prepare_params(params, compute_dtype=jnp.bfloat16):
    """Fold l1..l4 (and classify) into two affine maps, folding done in f32.

    params[name] = (W, b) with nn.Linear layout W: [out, in], b: [out].
    Returns (W_a, b_a, W_ac, b_ac) with weights cast to compute_dtype and
    biases kept in f32 (added after f32 accumulation).
    """
    def wt(name):
        w, b = params[name]
        return w.astype(jnp.float32).T, b.astype(jnp.float32)

    w1, b1 = wt("l1")
    w2, b2 = wt("l2")
    w3, b3 = wt("l3")
    w4, b4 = wt("l4")
    wc, bc = wt("classify")

    wa = w1 @ w2 @ w3 @ w4                         # [num_in, num_hid2]
    ba = ((b1 @ w2 + b2) @ w3 + b3) @ w4 + b4      # [num_hid2]
    wac = wa @ wc                                  # [num_in, num_out]
    bac = ba @ wc + bc                             # [num_out]

    return (wa.astype(compute_dtype),
            ba.reshape(1, -1),                     # f32
            wac.astype(compute_dtype),
            bac.reshape(1, -1))                    # f32


# ---------------------------------------------------------------------------
# Forward wrapper
# ---------------------------------------------------------------------------
@functools.partial(jax.jit, static_argnames=("block_b", "out_dtype"))
def _forward_impl(x, wa, ba, wac, bac, *, block_b, out_dtype):
    B, num_in = x.shape
    num_hid2 = wa.shape[1]
    num_out = wac.shape[1]

    x = x.astype(wa.dtype)                         # bf16 (or f32) MXU operands
    grid = (pl.cdiv(B, block_b),)                  # ragged last block is fine

    flops = 2 * B * num_in * (num_hid2 + num_out)
    bytes_accessed = int(
        x.size * x.dtype.itemsize
        + wa.size * wa.dtype.itemsize + ba.size * ba.dtype.itemsize
        + wac.size * wac.dtype.itemsize + bac.size * bac.dtype.itemsize
        + B * num_out * jnp.dtype(out_dtype).itemsize
        + B * num_hid2 * jnp.dtype(out_dtype).itemsize)

    out, x2 = pl.pallas_call(
        _mlp_pre_kernel,
        out_shape=(
            jax.ShapeDtypeStruct((B, num_out), out_dtype),
            jax.ShapeDtypeStruct((B, num_hid2), out_dtype),
        ),
        grid=grid,
        in_specs=[
            pl.BlockSpec((block_b, num_in), lambda i: (i, 0)),   # x: streamed
            pl.BlockSpec((num_in, num_hid2), lambda i: (0, 0)),  # W_a: resident
            pl.BlockSpec((1, num_hid2), lambda i: (0, 0)),       # b_a: resident
            pl.BlockSpec((num_in, num_out), lambda i: (0, 0)),   # W_ac: resident
            pl.BlockSpec((1, num_out), lambda i: (0, 0)),        # b_ac: resident
        ],
        out_specs=(
            pl.BlockSpec((block_b, num_out), lambda i: (i, 0)),
            pl.BlockSpec((block_b, num_hid2), lambda i: (i, 0)),
        ),
        # Batch rows are independent -> shard the batch grid across both
        # TensorCores on v7x. Blocks are tiny (<1 MiB) at these widths, so the
        # default scoped-VMEM limit is plenty; for very large num_in, single-
        # buffer the resident weights and/or set vmem_limit_bytes here.
        compiler_params=pltpu.CompilerParams(
            dimension_semantics=("parallel",),
        ),
        cost_estimate=pl.CostEstimate(
            flops=flops, transcendentals=0, bytes_accessed=bytes_accessed),
    )(x, wa, ba, wac, bac)

    return out, x2


def _choose_block_b(B):
    # Aim for ~8 grid steps at large B (v7x megacore wants >=4 parallel steps),
    # big tiles to amortize ~0.35us/step overhead, multiple of 16 so bf16 rows
    # fully pack sublanes, capped at 2048 (still far inside scoped VMEM).
    blk = _round_up(pl.cdiv(B, 8), 16)
    return int(max(16, min(2048, blk)))


def mlp_pre_forward(x, prepared, block_b=None, out_dtype=jnp.float32):
    """x: [B, num_in]; prepared from prepare_params(). Returns (out, x2)."""
    wa, ba, wac, bac = prepared
    if block_b is None:
        block_b = _choose_block_b(x.shape[0])
    return _forward_impl(x, wa, ba, wac, bac, block_b=block_b, out_dtype=out_dtype)


# ---------------------------------------------------------------------------
# Synthetic init + pure-JAX reference (layer-by-layer, matches PyTorch forward)
# ---------------------------------------------------------------------------
def init_params(key, num_in, num_hid1, num_hid2, num_out):
    dims = {
        "l1": (num_hid1, num_in),
        "l2": (num_hid2, num_hid1),
        "l3": (num_hid2, num_hid2),
        "l4": (num_hid2, num_hid2),
        "classify": (num_out, num_hid2),
    }
    params = {}
    for name, (fan_out, fan_in) in dims.items():
        key, kw, kb = jax.random.split(key, 3)
        bound = 1.0 / jnp.sqrt(fan_in)
        w = jax.random.uniform(kw, (fan_out, fan_in), jnp.float32, -bound, bound)
        b = jax.random.uniform(kb, (fan_out,), jnp.float32, -bound, bound)
        params[name] = (w, b)
    return params


def reference_forward(x, params):
    def lin(h, name):
        w, b = params[name]
        return h @ w.T + b
    h = lin(lin(lin(x, "l1"), "l2"), "l3")
    x2 = lin(h, "l4")
    out = lin(x2, "classify")
    return out, x2


if __name__ == "__main__":
    key = jax.random.PRNGKey(0)
    B, num_in, num_hid1, num_hid2, num_out = 8, 16, 32, 32, 8

    key, kx = jax.random.split(key)
    x = jax.random.normal(kx, (B, num_in), jnp.float32)
    params = init_params(key, num_in, num_hid1, num_hid2, num_out)
    ref_out, ref_x2 = reference_forward(x, params)

    # 1) f32 compute, f32 outputs: matches the layer-by-layer reference.
    prep_f32 = prepare_params(params, compute_dtype=jnp.float32)
    out, x2 = mlp_pre_forward(x, prep_f32)
    out = jax.block_until_ready(out)
    x2 = jax.block_until_ready(x2)
    assert out.shape == (B, num_out) and x2.shape == (B, num_hid2)
    assert out.dtype == jnp.float32 and x2.dtype == jnp.float32
    assert jnp.allclose(out, ref_out, atol=1e-3, rtol=1e-3)
    assert jnp.allclose(x2, ref_x2, atol=1e-3, rtol=1e-3)

    # 2) bf16 operands / f32 accumulation / bf16 output storage with a ragged
    #    multi-step batch grid (B=40, block_b=16 -> 3 grid steps, last partial).
    B2 = 40
    key, kx2 = jax.random.split(key)
    xb = jax.random.normal(kx2, (B2, num_in), jnp.float32)
    ref_out_b, ref_x2_b = reference_forward(xb, params)

    prep_bf16 = prepare_params(params, compute_dtype=jnp.bfloat16)
    out_b, x2_b = mlp_pre_forward(xb, prep_bf16, block_b=16, out_dtype=jnp.bfloat16)
    out_b = jax.block_until_ready(out_b)
    x2_b = jax.block_until_ready(x2_b)
    assert out_b.shape == (B2, num_out) and x2_b.shape == (B2, num_hid2)
    assert jnp.allclose(out_b.astype(jnp.float32), ref_out_b, atol=5e-2, rtol=5e-2)
    assert jnp.allclose(x2_b.astype(jnp.float32), ref_x2_b, atol=5e-2, rtol=5e-2)

    print("KERNEL_OK")
</pallas_src>

<mosaic_0001>
module attributes {stable_mosaic.version = 11 : i64} {
  func.func @_mlp_pre_kernel(%arg0: i32, %arg1: memref<16x16xf32, #tpu.memory_space<vmem>>, %arg2: memref<16x32xf32, #tpu.memory_space<vmem>>, %arg3: memref<1x32xf32, #tpu.memory_space<vmem>>, %arg4: memref<16x8xf32, #tpu.memory_space<vmem>>, %arg5: memref<1x8xf32, #tpu.memory_space<vmem>>, %arg6: memref<16x8xf32, #tpu.memory_space<vmem>>, %arg7: memref<16x32xf32, #tpu.memory_space<vmem>>) attributes {dimension_semantics = [#tpu.dimension_semantics<parallel>], iteration_bounds = array<i64: 1>, scalar_prefetch = 0 : i64, scratch_operands = 0 : i64, tpu.core_type = #tpu.core_type<tc>, window_params = [{transform_indices = @transform_0, window_bounds = array<i64: 16, 16>}, {pipeline_mode = #tpu.pipeline_mode<synchronous>, transform_indices = @transform_1, window_bounds = array<i64: 16, 32>}, {pipeline_mode = #tpu.pipeline_mode<synchronous>, transform_indices = @transform_2, window_bounds = array<i64: 1, 32>}, {pipeline_mode = #tpu.pipeline_mode<synchronous>, transform_indices = @transform_3, window_bounds = array<i64: 16, 8>}, {pipeline_mode = #tpu.pipeline_mode<synchronous>, transform_indices = @transform_4, window_bounds = array<i64: 1, 8>}, {transform_indices = @transform_5, window_bounds = array<i64: 16, 8>}, {transform_indices = @transform_6, window_bounds = array<i64: 16, 32>}]} {
    %c0 = arith.constant 0 : index
    %c0_0 = arith.constant 0 : index
    %0 = vector.load %arg1[%c0, %c0_0] : memref<16x16xf32, #tpu.memory_space<vmem>>, vector<16x16xf32>
    %c0_1 = arith.constant 0 : index
    %c0_2 = arith.constant 0 : index
    %1 = vector.load %arg2[%c0_1, %c0_2] : memref<16x32xf32, #tpu.memory_space<vmem>>, vector<16x32xf32>
    %cst = arith.constant dense<0.000000e+00> : vector<16x32xf32>
    %2 = tpu.matmul %0, %1, %cst {dimension_numbers = #tpu.dot_dimension_numbers<[1], [0], [0], [1], [0, 0, 1, 1], [], []>} : vector<16x16xf32>, vector<16x32xf32>, vector<16x32xf32> -> vector<16x32xf32>
    %c0_3 = arith.constant 0 : index
    %c0_4 = arith.constant 0 : index
    %3 = vector.load %arg3[%c0_3, %c0_4] : memref<1x32xf32, #tpu.memory_space<vmem>>, vector<1x32xf32>
    %4 = vector.broadcast %3 : vector<1x32xf32> to vector<16x32xf32>
    %5 = arith.addf %2, %4 : vector<16x32xf32>
    %c0_5 = arith.constant 0 : index
    %c0_6 = arith.constant 0 : index
    %6 = vector.load %arg4[%c0_5, %c0_6] : memref<16x8xf32, #tpu.memory_space<vmem>>, vector<16x8xf32>
    %cst_7 = arith.constant dense<0.000000e+00> : vector<16x8xf32>
    %7 = tpu.matmul %0, %6, %cst_7 {dimension_numbers = #tpu.dot_dimension_numbers<[1], [0], [0], [1], [0, 0, 1, 1], [], []>} : vector<16x16xf32>, vector<16x8xf32>, vector<16x8xf32> -> vector<16x8xf32>
    %c0_8 = arith.constant 0 : index
    %c0_9 = arith.constant 0 : index
    %8 = vector.load %arg5[%c0_8, %c0_9] : memref<1x8xf32, #tpu.memory_space<vmem>>, vector<1x8xf32>
    %9 = vector.broadcast %8 : vector<1x8xf32> to vector<16x8xf32>
    %10 = arith.addf %7, %9 : vector<16x8xf32>
    %c0_10 = arith.constant 0 : index
    %c0_11 = arith.constant 0 : index
    %11 = vector.load %arg7[%c0_10, %c0_11] : memref<16x32xf32, #tpu.memory_space<vmem>>, vector<16x32xf32>
    tpu.vector_store %arg7[%c0_10, %c0_11], %5 {strides = array<i32>} : memref<16x32xf32, #tpu.memory_space<vmem>>, vector<16x32xf32>,
    %c0_12 = arith.constant 0 : index
    %c0_13 = arith.constant 0 : index
    %12 = vector.load %arg6[%c0_12, %c0_13] : memref<16x8xf32, #tpu.memory_space<vmem>>, vector<16x8xf32>
    tpu.vector_store %arg6[%c0_12, %c0_13], %10 {strides = array<i32>} : memref<16x8xf32, #tpu.memory_space<vmem>>, vector<16x8xf32>,
    return
  }
  func.func @transform_0(%arg0: i32) -> (i32, i32) {
    %c0_i32 = arith.constant 0 : i32
    %c0_i32_0 = arith.constant 0 : i32
    return %arg0, %c0_i32 : i32, i32
  }
  func.func @transform_1(%arg0: i32) -> (i32, i32) {
    %c0_i32 = arith.constant 0 : i32
    %c0_i32_0 = arith.constant 0 : i32
    %c0_i32_1 = arith.constant 0 : i32
    return %c0_i32, %c0_i32_0 : i32, i32
  }
  func.func @transform_2(%arg0: i32) -> (i32, i32) {
    %c0_i32 = arith.constant 0 : i32
    %c0_i32_0 = arith.constant 0 : i32
    %c0_i32_1 = arith.constant 0 : i32
    return %c0_i32, %c0_i32_0 : i32, i32
  }
  func.func @transform_3(%arg0: i32) -> (i32, i32) {
    %c0_i32 = arith.constant 0 : i32
    %c0_i32_0 = arith.constant 0 : i32
    %c0_i32_1 = arith.constant 0 : i32
    return %c0_i32, %c0_i32_0 : i32, i32
  }
  func.func @transform_4(%arg0: i32) -> (i32, i32) {
    %c0_i32 = arith.constant 0 : i32
    %c0_i32_0 = arith.constant 0 : i32
    %c0_i32_1 = arith.constant 0 : i32
    return %c0_i32, %c0_i32_0 : i32, i32
  }
  func.func @transform_5(%arg0: i32) -> (i32, i32) {
    %c0_i32 = arith.constant 0 : i32
    %c0_i32_0 = arith.constant 0 : i32
    return %arg0, %c0_i32 : i32, i32
  }
  func.func @transform_6(%arg0: i32) -> (i32, i32) {
    %c0_i32 = arith.constant 0 : i32
    %c0_i32_0 = arith.constant 0 : i32
    return %arg0, %c0_i32 : i32, i32
  }
}

</mosaic_0001>

<llo_original>
// kernel: _forward_impl.1
$region0: #{_forward_impl.1}
  #allocation0 [shape = 'u32[]', space=smem, size = 0x4, offset = 0x4, fixed_abs, tag = 'smem constant byte address 0x4 - core index']
  #allocation1 [shape = 'u32[144,128]{1,0:T(1,128)}', space=vmem, size = 0x12000, scoped, tag = 'internal scratch']
  %s0 = inlined_call_operand.vmem [shape: f32[8,16], index: 0, kind: input, shape index: {}]
  %s1 = inlined_call_operand.vmem [shape: f32[16,32], index: 1, kind: input, shape index: {}]
  %s2 = inlined_call_operand.vmem [shape: f32[1,32], index: 2, kind: input, shape index: {}]
  %s3 = inlined_call_operand.vmem [shape: f32[16,8], index: 3, kind: input, shape index: {}]
  %s4 = inlined_call_operand.vmem [shape: f32[1,8], index: 4, kind: input, shape index: {}]
  %s5 = inlined_call_operand.hbm [shape: f32[8,8], index: 5, kind: output, shape index: {0}]
  %s6 = inlined_call_operand.hbm [shape: f32[8,32], index: 6, kind: output, shape index: {1}]
  %7 = xla_tuple %s5, %s6
  %s8 = sld [smem:[#allocation0]]
  $region38: #{_forward_impl.1} parent=0
    _
  %s10 = ssub.s32 1, %s8
  %s11 = scalar_select 0, %s10, %s8
  $region1: #{_forward_impl.1} parent=0
    #allocation2 [shape = 'u8[8192]{0}', space=vmem, size = 0x2000, scoped, tag = 'output window, operand 0, single buffered']
    #allocation3 [shape = 's32[1]{0}', space=sflag, size = 0x4, scoped, tag = 'scoped memory for _forward_impl.1']
    #allocation4 [shape = 'u8[8192]{0}', space=vmem, size = 0x2000, scoped, tag = 'output window, operand 1, single buffered']
    #allocation5 [shape = 's32[1]{0}', space=sflag, size = 0x4, scoped, tag = 'scoped memory for _forward_impl.1']
    %12 = vsyncpa [#allocation3], 0
    %13 = vsyncpa [#allocation5], 0
    // Predicated region
    $region2: #{_forward_impl.1} parent=1 // pred_check
      _
    $region3: #{_forward_impl.1} parent=1 // pred_check_branch
      %15 = sbr.rel (0) target = $region5
    $region4: #{_forward_impl.1} parent=1 // pred_region
      _
    $region5: #{_forward_impl.1} parent=1 // pred_fallthru
      _
    // Predicated region
    $region6: #{_forward_impl.1} parent=1 // pred_check
      _
    $region7: #{_forward_impl.1} parent=1 // pred_check_branch
      %17 = sbr.rel (0) target = $region9
    $region8: #{_forward_impl.1} parent=1 // pred_region
      _
    $region9: #{_forward_impl.1} parent=1 // pred_fallthru
      _
    // Predicated region
    $region10: #{_forward_impl.1} parent=1 // pred_check
      _
    $region11: #{_forward_impl.1} parent=1 // pred_check_branch
      %19 = sbr.rel (0) target = $region13
    $region12: #{_forward_impl.1} parent=1 // pred_region
      _
    $region13: #{_forward_impl.1} parent=1 // pred_fallthru
      _
    // Predicated region
    $region14: #{_forward_impl.1} parent=1 // pred_check
      _
    $region15: #{_forward_impl.1} parent=1 // pred_check_branch
      %21 = sbr.rel (0) target = $region17
    $region16: #{_forward_impl.1} parent=1 // pred_region
      _
    $region17: #{_forward_impl.1} parent=1 // pred_fallthru
      _
    // Predicated region
    $region18: #{_forward_impl.1} parent=1 // pred_check
      _
    $region19: #{_forward_impl.1} parent=1 // pred_check_branch
      %23 = sbr.rel (0) target = $region21
    $region20: #{_forward_impl.1} parent=1 // pred_region
      _
    $region21: #{_forward_impl.1} parent=1 // pred_fallthru
      _
    %v24 = vld [vmem:[%s0] sm:$0xff]
    %v25 = vld [vmem:[%s0 + $0x8] sm:$0xff]
    %v26 = vld [vmem:[%s1] sm:$0xff]
    %v27 = vld [vmem:[%s1 + $0x8] sm:$0xff]
    %v28 = vld [vmem:[%s2] sm:$0x1]
    %v30 = vlaneseq
    %v31 = vshrl.u32 %v30, 7
    %v32 = vsub.s32 0, %v31
    %v33 = vrot.slane %v28, %v32
    %vm35 = vcmask 130048
    %v37 = vsel %vm35, %v24, 0
    %v40 = vsel %vm35, %v25, 0
    %42 = vmatprep.subr.mxu0 0.0
    %43 = vmatpush1.msra.mxu0 %v26
    %44 = vmatprep.subr.mxu0 0.0
    %45 = vmatpush1.msra.mxu0 %v27
    %46 = vmatprep.subr.mxu0 0.0
    %47 = vmatpush1.msra.mxu0 0.0
    %48 = vmatprep.subr.mxu0 0.0
    %49 = vmatpush1.msra.mxu0 0.0
    %50 = vmatprep.subr.mxu0 0.0
    %51 = vmatpush1.msra.mxu0 0.0
    %52 = vmatprep.subr.mxu0 0.0
    %53 = vmatpush1.msra.mxu0 0.0
    %54 = vmatprep.subr.mxu0 0.0
    %55 = vmatpush1.msra.mxu0 0.0
    %56 = vmatprep.subr.mxu0 0.0
    %57 = vmatpush1.msra.mxu0 0.0
    %58 = vmatprep.subr.mxu0 0.0
    %59 = vmatpush1.msra.mxu0 0.0
    %60 = vmatprep.subr.mxu0 0.0
    %61 = vmatpush1.msra.mxu0 0.0
    %62 = vmatprep.subr.mxu0 0.0
    %63 = vmatpush1.msra.mxu0 0.0
    %64 = vmatprep.subr.mxu0 0.0
    %65 = vmatpush1.msra.mxu0 0.0
    %66 = vmatprep.subr.mxu0 0.0
    %67 = vmatpush1.msra.mxu0 0.0
    %68 = vmatprep.subr.mxu0 0.0
    %69 = vmatpush1.msra.mxu0 0.0
    %70 = vmatprep.subr.mxu0 0.0
    %71 = vmatpush1.msra.mxu0 0.0
    %72 = vmatprep.subr.mxu0 0.0
    %73 = vmatpush1.msra.mxu0 0.0
    %74 = vmatprep.subr.mxu0 0.0
    %75 = vmatpush1.msra.mxu0 0.0
    %76 = vmatprep.subr.mxu0 0.0
    %77 = vmatpush1.msra.mxu0 0.0
    %78 = vmatprep.subr.mxu0 0.0
    %79 = vmatpush1.msra.mxu0 0.0
    %80 = vmatprep.subr.mxu0 0.0
    %81 = vmatpush1.msra.mxu0 0.0
    %82 = vmatprep.subr.mxu0 0.0
    %83 = vmatpush1.msra.mxu0 0.0
    %84 = vmatprep.subr.mxu0 0.0
    %85 = vmatpush1.msra.mxu0 0.0
    %86 = vmatprep.subr.mxu0 0.0
    %87 = vmatpush1.msra.mxu0 0.0
    %88 = vmatprep.subr.mxu0 0.0
    %89 = vmatpush1.msra.mxu0 0.0
    %90 = vmatprep.subr.mxu0 0.0
    %91 = vmatpush1.msra.mxu0 0.0
    %92 = vmatprep.subr.mxu0 0.0
    %93 = vmatpush1.msra.mxu0 0.0
    %94 = vmatprep.subr.mxu0 0.0
    %95 = vmatpush1.msra.mxu0 0.0
    %96 = vmatprep.subr.mxu0 0.0
    %97 = vmatpush1.msra.mxu0 0.0
    %98 = vmatprep.subr.mxu0 0.0
    %99 = vmatpush1.msra.mxu0 0.0
    %100 = vmatprep.subr.mxu0 0.0
    %101 = vmatpush1.msra.mxu0 0.0
    %102 = vmatprep.subr.mxu0 0.0
    %103 = vmatpush1.msra.mxu0 0.0
    %104 = vmatprep.subr.mxu0 0.0
    %105 = vmatpush1.msra.mxu0 0.0
    %106 = vmatprep.mubr.f32.mxu0 0.0
    %107 = vmatmul.mubr.f32.gmra.mrb[0].mxu0 %v37
    %v108 = vpop.f32.mrb[0].mxu0
    %v109 = vadd.f32 %v33, %v108
    %v110 = vpop.f32.mrb[0].mxu0
    %111 = vmatprep.mubr.f32.mxu0 0.0
    %112 = vmatmul.mubr.f32.gmra.mrb[0].mxu0 %v40
    %v113 = vpop.f32.mrb[0].mxu0
    %v114 = vadd.f32 %v33, %v113
    %v115 = vpop.f32.mrb[0].mxu0
    %116 = vdwg.mxu0
    %v117 = vld [vmem:[%s3] sm:$0xff]
    %v118 = vld [vmem:[%s3 + $0x8] sm:$0xff]
    %v119 = vld [vmem:[%s4] sm:$0x1]
    %v121 = vlaneseq
    %v122 = vshrl.u32 %v121, 7
    %v123 = vsub.s32 0, %v122
    %v124 = vrot.slane %v119, %v123
    %126 = vmatprep.subr.mxu0 0.0
    %127 = vmatpush1.msra.mxu0 %v117
    %128 = vmatprep.subr.mxu0 0.0
    %129 = vmatpush1.msra.mxu0 %v118
    %130 = vmatprep.subr.mxu0 0.0
    %131 = vmatpush1.msra.mxu0 0.0
    %132 = vmatprep.subr.mxu0 0.0
    %133 = vmatpush1.msra.mxu0 0.0
    %134 = vmatprep.subr.mxu0 0.0
    %135 = vmatpush1.msra.mxu0 0.0
    %136 = vmatprep.subr.mxu0 0.0
    %137 = vmatpush1.msra.mxu0 0.0
    %138 = vmatprep.subr.mxu0 0.0
    %139 = vmatpush1.msra.mxu0 0.0
    %140 = vmatprep.subr.mxu0 0.0
    %141 = vmatpush1.msra.mxu0 0.0
    %142 = vmatprep.subr.mxu0 0.0
    %143 = vmatpush1.msra.mxu0 0.0
    %144 = vmatprep.subr.mxu0 0.0
    %145 = vmatpush1.msra.mxu0 0.0
    %146 = vmatprep.subr.mxu0 0.0
    %147 = vmatpush1.msra.mxu0 0.0
    %148 = vmatprep.subr.mxu0 0.0
    %149 = vmatpush1.msra.mxu0 0.0
    %150 = vmatprep.subr.mxu0 0.0
    %151 = vmatpush1.msra.mxu0 0.0
    %152 = vmatprep.subr.mxu0 0.0
    %153 = vmatpush1.msra.mxu0 0.0
    %154 = vmatprep.subr.mxu0 0.0
    %155 = vmatpush1.msra.mxu0 0.0
    %156 = vmatprep.subr.mxu0 0.0
    %157 = vmatpush1.msra.mxu0 0.0
    %158 = vmatprep.subr.mxu0 0.0
    %159 = vmatpush1.msra.mxu0 0.0
    %160 = vmatprep.subr.mxu0 0.0
    %161 = vmatpush1.msra.mxu0 0.0
    %162 = vmatprep.subr.mxu0 0.0
    %163 = vmatpush1.msra.mxu0 0.0
    %164 = vmatprep.subr.mxu0 0.0
    %165 = vmatpush1.msra.mxu0 0.0
    %166 = vmatprep.subr.mxu0 0.0
    %167 = vmatpush1.msra.mxu0 0.0
    %168 = vmatprep.subr.mxu0 0.0
    %169 = vmatpush1.msra.mxu0 0.0
    %170 = vmatprep.subr.mxu0 0.0
    %171 = vmatpush1.msra.mxu0 0.0
    %172 = vmatprep.subr.mxu0 0.0
    %173 = vmatpush1.msra.mxu0 0.0
    %174 = vmatprep.subr.mxu0 0.0
    %175 = vmatpush1.msra.mxu0 0.0
    %176 = vmatprep.subr.mxu0 0.0
    %177 = vmatpush1.msra.mxu0 0.0
    %178 = vmatprep.subr.mxu0 0.0
    %179 = vmatpush1.msra.mxu0 0.0
    %180 = vmatprep.subr.mxu0 0.0
    %181 = vmatpush1.msra.mxu0 0.0
    %182 = vmatprep.subr.mxu0 0.0
    %183 = vmatpush1.msra.mxu0 0.0
    %184 = vmatprep.subr.mxu0 0.0
    %185 = vmatpush1.msra.mxu0 0.0
    %186 = vmatprep.subr.mxu0 0.0
    %187 = vmatpush1.msra.mxu0 0.0
    %188 = vmatprep.subr.mxu0 0.0
    %189 = vmatpush1.msra.mxu0 0.0
    %190 = vmatprep.mubr.f32.mxu0 0.0
    %191 = vmatmul.mubr.f32.gmra.mrb[0].mxu0 %v37
    %v192 = vpop.f32.mrb[0].mxu0
    %v193 = vadd.f32 %v124, %v192
    %v194 = vpop.f32.mrb[0].mxu0
    %195 = vmatprep.mubr.f32.mxu0 0.0
    %196 = vmatmul.mubr.f32.gmra.mrb[0].mxu0 %v40
    %v197 = vpop.f32.mrb[0].mxu0
    %v198 = vadd.f32 %v124, %v197
    %v199 = vpop.f32.mrb[0].mxu0
    %200 = vdwg.mxu0
    %vm201 = vcmask 261120
    %202 = vst.msk [vmem:[#allocation4] sm:$0xff] %vm201, %v109
    %203 = vst.msk [vmem:[#allocation4 + $0x8] sm:$0xff] %vm201, %v114
    %vm204 = vcmask 64512
    %205 = vst.msk [vmem:[#allocation2] sm:$0xff] %vm204, %v193
    %206 = vst.msk [vmem:[#allocation2 + $0x8] sm:$0xff] %vm204, %v198
    // Predicated region
    $region22: #{_forward_impl.1} parent=1 // pred_check
      _
    $region23: #{_forward_impl.1} parent=1 // pred_check_branch
      %208 = sbr.rel (0) target = $region25
    $region24: #{_forward_impl.1} parent=1 // pred_region
      %s210 = ssub.s32 256, 128
      %211 = vsyncadd [#allocation3], %s210
      %s212 = sshll.u32 [#allocation2], 4
      %s213 = int_to_ptr.vmem [resolvable:$true] %s212
      %218 = dma.vmem_to_hbm [thread:$0]  %s213, 128, %s5, [#allocation3], 128, 128, 8
    $region25: #{_forward_impl.1} parent=1 // pred_fallthru
      _
    // Predicated region
    $region26: #{_forward_impl.1} parent=1 // pred_check
      _
    $region27: #{_forward_impl.1} parent=1 // pred_check_branch
      %220 = sbr.rel (0) target = $region29
    $region28: #{_forward_impl.1} parent=1 // pred_region
      %s222 = ssub.s32 256, 128
      %223 = vsyncadd [#allocation5], %s222
      %s224 = sshll.u32 [#allocation4], 4
      %s225 = int_to_ptr.vmem [resolvable:$true] %s224
      %230 = dma.vmem_to_hbm [thread:$0]  %s225, 128, %s6, [#allocation5], 128, 128, 8
    $region29: #{_forward_impl.1} parent=1 // pred_fallthru
      _
    // Predicated region
    $region30: #{_forward_impl.1} parent=1 // pred_check
      _
    $region31: #{_forward_impl.1} parent=1 // pred_check_branch
      %232 = sbr.rel (0) target = $region33
    $region32: #{_forward_impl.1} parent=1 // pred_region
      %233 = dma.done [#allocation3], 256
    $region33: #{_forward_impl.1} parent=1 // pred_fallthru
      _
    // Predicated region
    $region34: #{_forward_impl.1} parent=1 // pred_check
      _
    $region35: #{_forward_impl.1} parent=1 // pred_check_branch
      %235 = sbr.rel (0) target = $region37
    $region36: #{_forward_impl.1} parent=1 // pred_region
      %236 = dma.done [#allocation5], 256
    $region37: #{_forward_impl.1} parent=1 // pred_fallthru
      _
    %237 = vsyncpa [#allocation3], 1
    %238 = vsyncpa [#allocation5], 1

</llo_original>
